<compile_context>
chip_gen: v7x
topology: tpu7x:2x2x1
jax: 0.10.0
libtpu: 0.0.40
codegen_flags: <defaults>
</compile_context>

<pallas_src>
import jax
import jax.numpy as jnp
from jax.experimental import pallas as pl
from jax.experimental.pallas import tpu as pltpu


def _quad_kernel(coef_ref, x_ref, o_ref):
    # coef_ref: (3,) f32 in SMEM -> [a, b, c], read once per grid step.
    a = coef_ref[0]
    b = coef_ref[1]
    c = coef_ref[2]
    x = x_ref[...].astype(jnp.float32)
    # Horner form: 2 mul + 2 add per element, f32 accumulate, explicit downcast.
    o_ref[...] = ((a * x + b) * x + c).astype(o_ref.dtype)


def _default_block_bytes():
    # v7x streams HBM ~2.3x faster per TC than v6e, so it needs bigger blocks
    # to amortize the fixed ~0.35us grid-step overhead (still well under half
    # of its 64 MiB VMEM when double-buffered).
    try:
        kind = jax.devices()[0].device_kind.lower()
    except Exception:
        kind = ""
    if "v7" in kind or "tpu7" in kind:
        return 8 * 1024 * 1024
    return 4 * 1024 * 1024


def quad_forward(x, a, b, c, *, block_bytes=None):
    """Computes a*x**2 + b*x + c elementwise with a Pallas TPU kernel."""
    orig_shape = x.shape
    n = x.size
    # PyTorch promotes integer inputs against float32 params; floating inputs
    # keep their dtype (bf16 stays bf16).
    out_dtype = x.dtype if jnp.issubdtype(x.dtype, jnp.floating) else jnp.float32

    if block_bytes is None:
        block_bytes = _default_block_bytes()

    # ---- Layout-compatible collapse (never forces an HBM relayout copy) ----
    # TPU tiles only the last two dims (8 sublanes x 128 lanes).  Collapsing
    # leading dims is always layout-preserving; folding the sublane dim into
    # the rows is only layout-preserving when it is a multiple of 8.
    if x.ndim == 0:
        xk = jnp.reshape(x, (1, 1))
    elif x.ndim == 1:
        xk = jnp.reshape(x, (1, x.shape[0]))
    elif x.ndim == 2:
        xk = x
    else:
        h, w = x.shape[-2], x.shape[-1]
        if h % 8 == 0:
            xk = jnp.reshape(x, (-1, w))       # fold sublane dim into rows (free)
        else:
            xk = jnp.reshape(x, (-1, h, w))    # collapse leading dims only (free)

    rows = xk.shape[0]
    trailing = tuple(xk.shape[1:])
    in_itemsize = jnp.dtype(x.dtype).itemsize
    out_itemsize = jnp.dtype(out_dtype).itemsize

    # Padded (VMEM-tile) bytes of one leading-index "row" of the kernel view.
    tdims = list(trailing)
    tdims[-1] = pl.cdiv(tdims[-1], 128) * 128
    if len(tdims) >= 2:
        tdims[-2] = pl.cdiv(tdims[-2], 8) * 8
    row_bytes = in_itemsize
    for d in tdims:
        row_bytes *= d

    sublane_blocked = (xk.ndim == 2)   # rows are the sublane dim -> %8 rule applies
    if sublane_blocked:
        total_padded_bytes = pl.cdiv(rows, 8) * 8 * row_bytes
    else:
        total_padded_bytes = rows * row_bytes

    tr = max(1, block_bytes // row_bytes)
    # Never collapse the grid to a single step for non-tiny arrays: >=4 steps
    # keeps the DMA pipeline overlapped and lets v7x split work over both TCs.
    if total_padded_bytes > 2 * 1024 * 1024:
        tr = min(tr, pl.cdiv(rows, 4))

    if tr >= rows:
        tile_rows = rows                        # full extent (always legal)
    elif sublane_blocked:
        tile_rows = max(8, (tr // 8) * 8)       # sublane dim: multiple of 8
    else:
        tile_rows = tr                          # pure leading dim: unconstrained

    num_steps = pl.cdiv(rows, tile_rows)
    block_shape = (tile_rows,) + trailing
    ndims = xk.ndim
    idx_map = lambda i: (i,) + (0,) * (ndims - 1)

    # Explicit scoped-VMEM limit: in+out, double-buffered ~= 4x block bytes.
    if sublane_blocked:
        block_vmem = pl.cdiv(tile_rows, 8) * 8 * row_bytes
    else:
        block_vmem = tile_rows * row_bytes
    vmem_limit = int(min(48 * 1024 * 1024,
                         max(32 * 1024 * 1024, 4 * block_vmem + 2 * 1024 * 1024)))

    coefs = jnp.stack([jnp.asarray(a, jnp.float32),
                       jnp.asarray(b, jnp.float32),
                       jnp.asarray(c, jnp.float32)])

    out_k = pl.pallas_call(
        _quad_kernel,
        out_shape=jax.ShapeDtypeStruct(xk.shape, out_dtype),
        grid_spec=pltpu.PrefetchScalarGridSpec(
            num_scalar_prefetch=0,
            grid=(num_steps,),
            in_specs=[
                pl.BlockSpec(memory_space=pltpu.SMEM),   # [a, b, c]
                pl.BlockSpec(block_shape, idx_map),      # x tile
            ],
            out_specs=pl.BlockSpec(block_shape, idx_map),
        ),
        compiler_params=pltpu.CompilerParams(
            dimension_semantics=("parallel",),           # megacore split on v7x
            vmem_limit_bytes=vmem_limit,
        ),
        cost_estimate=pl.CostEstimate(
            flops=4 * n,
            transcendentals=0,
            bytes_accessed=n * (in_itemsize + out_itemsize),
        ),
    )(coefs, xk)

    # Inverse of the layout-compatible collapse (also copy-free).
    return jnp.reshape(out_k, orig_shape)


if __name__ == "__main__":
    key = jax.random.PRNGKey(0)
    kx, ka, kb, kc, kx2, kx3 = jax.random.split(key, 6)

    # Deterministic "randn(())" scalar parameters.
    a = jax.random.normal(ka, (), dtype=jnp.float32)
    b = jax.random.normal(kb, (), dtype=jnp.float32)
    c = jax.random.normal(kc, (), dtype=jnp.float32)

    # Small NCHW input, consistent with an elementwise forward on image-like data.
    x = jax.random.normal(kx, (2, 4, 16, 16), dtype=jnp.float32)
    out = jax.block_until_ready(quad_forward(x, a, b, c))
    ref = a * x ** 2 + b * x + c
    assert out.shape == x.shape and out.dtype == x.dtype
    assert jnp.allclose(out, ref, atol=1e-5, rtol=1e-5)

    # Ragged trailing dims (sublane dim not a multiple of 8) -> native 3-D path.
    x_odd = jax.random.normal(kx2, (3, 5, 7, 11), dtype=jnp.float32)
    out_odd = jax.block_until_ready(quad_forward(x_odd, a, b, c))
    assert jnp.allclose(out_odd, a * x_odd ** 2 + b * x_odd + c, atol=1e-5, rtol=1e-5)

    # Mid-size input exercising the multi-step pipelined / "parallel" grid path.
    x_big = jax.random.normal(kx3, (4, 16, 64, 256), dtype=jnp.float32)
    out_big = jax.block_until_ready(quad_forward(x_big, a, b, c))
    assert jnp.allclose(out_big, a * x_big ** 2 + b * x_big + c, atol=1e-5, rtol=1e-5)

    print("KERNEL_OK")
</pallas_src>

<mosaic_0001>
module attributes {stable_mosaic.version = 11 : i64} {
  func.func @_quad_kernel(%arg0: i32, %arg1: memref<3xf32, #tpu.memory_space<smem>>, %arg2: memref<128x16xf32, #tpu.memory_space<vmem>>, %arg3: memref<128x16xf32, #tpu.memory_space<vmem>>) attributes {dimension_semantics = [#tpu.dimension_semantics<parallel>], iteration_bounds = array<i64: 1>, scalar_prefetch = 0 : i64, scratch_operands = 0 : i64, tpu.core_type = #tpu.core_type<tc>, window_params = [{transform_indices = @transform_0, window_bounds = array<i64: 3>}, {transform_indices = @transform_1, window_bounds = array<i64: 128, 16>}, {transform_indices = @transform_2, window_bounds = array<i64: 128, 16>}]} {
    %c0 = arith.constant 0 : index
    %0 = memref.load %arg1[%c0] : memref<3xf32, #tpu.memory_space<smem>>
    %c1 = arith.constant 1 : index
    %1 = memref.load %arg1[%c1] : memref<3xf32, #tpu.memory_space<smem>>
    %c2 = arith.constant 2 : index
    %2 = memref.load %arg1[%c2] : memref<3xf32, #tpu.memory_space<smem>>
    %c0_0 = arith.constant 0 : index
    %c0_1 = arith.constant 0 : index
    %3 = vector.load %arg2[%c0_0, %c0_1] : memref<128x16xf32, #tpu.memory_space<vmem>>, vector<128x16xf32>
    %4 = vector.broadcast %0 : f32 to vector<128x16xf32>
    %5 = arith.mulf %4, %3 : vector<128x16xf32>
    %6 = vector.broadcast %1 : f32 to vector<128x16xf32>
    %7 = arith.addf %5, %6 : vector<128x16xf32>
    %8 = arith.mulf %7, %3 : vector<128x16xf32>
    %9 = vector.broadcast %2 : f32 to vector<128x16xf32>
    %10 = arith.addf %8, %9 : vector<128x16xf32>
    %c0_2 = arith.constant 0 : index
    %c0_3 = arith.constant 0 : index
    %11 = vector.load %arg3[%c0_2, %c0_3] : memref<128x16xf32, #tpu.memory_space<vmem>>, vector<128x16xf32>
    tpu.vector_store %arg3[%c0_2, %c0_3], %10 {strides = array<i32>} : memref<128x16xf32, #tpu.memory_space<vmem>>, vector<128x16xf32>,
    return
  }
  func.func @transform_0(%arg0: i32) -> i32 {
    %c0_i32 = arith.constant 0 : i32
    %c0_i32_0 = arith.constant 0 : i32
    return %c0_i32 : i32
  }
  func.func @transform_1(%arg0: i32) -> (i32, i32) {
    %c0_i32 = arith.constant 0 : i32
    %c0_i32_0 = arith.constant 0 : i32
    return %arg0, %c0_i32 : i32, i32
  }
  func.func @transform_2(%arg0: i32) -> (i32, i32) {
    %c0_i32 = arith.constant 0 : i32
    %c0_i32_0 = arith.constant 0 : i32
    return %arg0, %c0_i32 : i32, i32
  }
}

</mosaic_0001>

<llo_original>
// kernel: tpu_custom_call.1
$region0: #{tpu_custom_call.1}
  #allocation0 [shape = 'u32[]', space=smem, size = 0x4, offset = 0x4, fixed_abs, tag = 'smem constant byte address 0x4 - core index']
  #allocation1 [shape = 'u32[144,128]{1,0:T(1,128)}', space=vmem, size = 0x12000, scoped, tag = 'internal scratch']
  %s0 = inlined_call_operand.vmem [shape: f32[3], index: 0, kind: input, shape index: {}]
  %s1 = inlined_call_operand.vmem [shape: f32[128,16], index: 1, kind: input, shape index: {}]
  %s2 = inlined_call_operand.vmem [shape: f32[128,16], index: 2, kind: output, shape index: {}]
  %s3 = sld [smem:[#allocation0]]
  $region22: #{tpu_custom_call.1} parent=0
    _
  %s5 = ssub.s32 1, %s3
  %s6 = scalar_select 0, %s5, %s3
  $region1: #{tpu_custom_call.1} parent=0
    #allocation2 [shape = 'u8[512]{0}', space=smem, size = 0x200, scoped, tag = 'input window, operand 0, single buffered']
    #allocation3 [shape = 's32[1]{0}', space=sflag, size = 0x4, scoped, tag = 'scoped memory for tpu_custom_call.1']
    %7 = vsyncpa [#allocation3], 0
    // Predicated region
    $region2: #{tpu_custom_call.1} parent=1 // pred_check
      _
    $region3: #{tpu_custom_call.1} parent=1 // pred_check_branch
      %9 = sbr.rel (0) target = $region5
    $region4: #{tpu_custom_call.1} parent=1 // pred_region
      %s11 = ssub.s32 16, 16
      %12 = vsyncadd [#allocation3], %s11
      %s14 = sshll.u32 %s0, 4
      %s15 = int_to_ptr.vmem [resolvable:$true] %s14
      %17 = dma.vmem_to_smem %s15, 16, [#allocation2], [#allocation3]
    $region5: #{tpu_custom_call.1} parent=1 // pred_fallthru
      _
    // Predicated region
    $region6: #{tpu_custom_call.1} parent=1 // pred_check
      _
    $region7: #{tpu_custom_call.1} parent=1 // pred_check_branch
      %19 = sbr.rel (0) target = $region9
    $region8: #{tpu_custom_call.1} parent=1 // pred_region
      _
    $region9: #{tpu_custom_call.1} parent=1 // pred_fallthru
      _
    // Predicated region
    $region10: #{tpu_custom_call.1} parent=1 // pred_check
      _
    $region11: #{tpu_custom_call.1} parent=1 // pred_check_branch
      %21 = sbr.rel (0) target = $region13
    $region12: #{tpu_custom_call.1} parent=1 // pred_region
      %22 = dma.done [#allocation3], 16
    $region13: #{tpu_custom_call.1} parent=1 // pred_fallthru
      _
    %23 = sfence
    %s24 = sld [smem:[#allocation2]]
    %s25 = sld [smem:[#allocation2 + $0x1]]
    %s26 = sld [smem:[#allocation2 + $0x2]]
    %v27 = vld [vmem:[%s1] sm:$0xff]
    %v28 = vld [vmem:[%s1 + $0x8] sm:$0xff]
    %v29 = vld [vmem:[%s1 + $0x10] sm:$0xff]
    %v30 = vld [vmem:[%s1 + $0x18] sm:$0xff]
    %v31 = vld [vmem:[%s1 + $0x20] sm:$0xff]
    %v32 = vld [vmem:[%s1 + $0x28] sm:$0xff]
    %v33 = vld [vmem:[%s1 + $0x30] sm:$0xff]
    %v34 = vld [vmem:[%s1 + $0x38] sm:$0xff]
    %v35 = vld [vmem:[%s1 + $0x40] sm:$0xff]
    %v36 = vld [vmem:[%s1 + $0x48] sm:$0xff]
    %v37 = vld [vmem:[%s1 + $0x50] sm:$0xff]
    %v38 = vld [vmem:[%s1 + $0x58] sm:$0xff]
    %v39 = vld [vmem:[%s1 + $0x60] sm:$0xff]
    %v40 = vld [vmem:[%s1 + $0x68] sm:$0xff]
    %v41 = vld [vmem:[%s1 + $0x70] sm:$0xff]
    %v42 = vld [vmem:[%s1 + $0x78] sm:$0xff]
    %v43 = vstv %s24
    %v44 = vmul.f32 %v43, %v27
    %v45 = vmul.f32 %v43, %v28
    %v46 = vmul.f32 %v43, %v29
    %v47 = vmul.f32 %v43, %v30
    %v48 = vmul.f32 %v43, %v31
    %v49 = vmul.f32 %v43, %v32
    %v50 = vmul.f32 %v43, %v33
    %v51 = vmul.f32 %v43, %v34
    %v52 = vmul.f32 %v43, %v35
    %v53 = vmul.f32 %v43, %v36
    %v54 = vmul.f32 %v43, %v37
    %v55 = vmul.f32 %v43, %v38
    %v56 = vmul.f32 %v43, %v39
    %v57 = vmul.f32 %v43, %v40
    %v58 = vmul.f32 %v43, %v41
    %v59 = vmul.f32 %v43, %v42
    %v60 = vstv %s25
    %v61 = vadd.f32 %v44, %v60
    %v62 = vadd.f32 %v45, %v60
    %v63 = vadd.f32 %v46, %v60
    %v64 = vadd.f32 %v47, %v60
    %v65 = vadd.f32 %v48, %v60
    %v66 = vadd.f32 %v49, %v60
    %v67 = vadd.f32 %v50, %v60
    %v68 = vadd.f32 %v51, %v60
    %v69 = vadd.f32 %v52, %v60
    %v70 = vadd.f32 %v53, %v60
    %v71 = vadd.f32 %v54, %v60
    %v72 = vadd.f32 %v55, %v60
    %v73 = vadd.f32 %v56, %v60
    %v74 = vadd.f32 %v57, %v60
    %v75 = vadd.f32 %v58, %v60
    %v76 = vadd.f32 %v59, %v60
    %v77 = vmul.f32 %v61, %v27
    %v78 = vmul.f32 %v62, %v28
    %v79 = vmul.f32 %v63, %v29
    %v80 = vmul.f32 %v64, %v30
    %v81 = vmul.f32 %v65, %v31
    %v82 = vmul.f32 %v66, %v32
    %v83 = vmul.f32 %v67, %v33
    %v84 = vmul.f32 %v68, %v34
    %v85 = vmul.f32 %v69, %v35
    %v86 = vmul.f32 %v70, %v36
    %v87 = vmul.f32 %v71, %v37
    %v88 = vmul.f32 %v72, %v38
    %v89 = vmul.f32 %v73, %v39
    %v90 = vmul.f32 %v74, %v40
    %v91 = vmul.f32 %v75, %v41
    %v92 = vmul.f32 %v76, %v42
    %v93 = vstv %s26
    %v94 = vadd.f32 %v77, %v93
    %v95 = vadd.f32 %v78, %v93
    %v96 = vadd.f32 %v79, %v93
    %v97 = vadd.f32 %v80, %v93
    %v98 = vadd.f32 %v81, %v93
    %v99 = vadd.f32 %v82, %v93
    %v100 = vadd.f32 %v83, %v93
    %v101 = vadd.f32 %v84, %v93
    %v102 = vadd.f32 %v85, %v93
    %v103 = vadd.f32 %v86, %v93
    %v104 = vadd.f32 %v87, %v93
    %v105 = vadd.f32 %v88, %v93
    %v106 = vadd.f32 %v89, %v93
    %v107 = vadd.f32 %v90, %v93
    %v108 = vadd.f32 %v91, %v93
    %v109 = vadd.f32 %v92, %v93
    %vm110 = vcmask 130048
    %111 = vst.msk [vmem:[%s2] sm:$0xff] %vm110, %v94
    %112 = vst.msk [vmem:[%s2 + $0x8] sm:$0xff] %vm110, %v95
    %113 = vst.msk [vmem:[%s2 + $0x10] sm:$0xff] %vm110, %v96
    %114 = vst.msk [vmem:[%s2 + $0x18] sm:$0xff] %vm110, %v97
    %115 = vst.msk [vmem:[%s2 + $0x20] sm:$0xff] %vm110, %v98
    %116 = vst.msk [vmem:[%s2 + $0x28] sm:$0xff] %vm110, %v99
    %117 = vst.msk [vmem:[%s2 + $0x30] sm:$0xff] %vm110, %v100
    %118 = vst.msk [vmem:[%s2 + $0x38] sm:$0xff] %vm110, %v101
    %119 = vst.msk [vmem:[%s2 + $0x40] sm:$0xff] %vm110, %v102
    %120 = vst.msk [vmem:[%s2 + $0x48] sm:$0xff] %vm110, %v103
    %121 = vst.msk [vmem:[%s2 + $0x50] sm:$0xff] %vm110, %v104
    %122 = vst.msk [vmem:[%s2 + $0x58] sm:$0xff] %vm110, %v105
    %123 = vst.msk [vmem:[%s2 + $0x60] sm:$0xff] %vm110, %v106
    %124 = vst.msk [vmem:[%s2 + $0x68] sm:$0xff] %vm110, %v107
    %125 = vst.msk [vmem:[%s2 + $0x70] sm:$0xff] %vm110, %v108
    %126 = vst.msk [vmem:[%s2 + $0x78] sm:$0xff] %vm110, %v109
    // Predicated region
    $region14: #{tpu_custom_call.1} parent=1 // pred_check
      _
    $region15: #{tpu_custom_call.1} parent=1 // pred_check_branch
      %128 = sbr.rel (0) target = $region17
    $region16: #{tpu_custom_call.1} parent=1 // pred_region
      _
    $region17: #{tpu_custom_call.1} parent=1 // pred_fallthru
      _
    // Predicated region
    $region18: #{tpu_custom_call.1} parent=1 // pred_check
      _
    $region19: #{tpu_custom_call.1} parent=1 // pred_check_branch
      %130 = sbr.rel (0) target = $region21
    $region20: #{tpu_custom_call.1} parent=1 // pred_region
      _
    $region21: #{tpu_custom_call.1} parent=1 // pred_fallthru
      _
    %131 = vsyncpa [#allocation3], 1

</llo_original>
